<compile_context>
chip_gen: v6e
topology: v6e:2x2x1
jax: 0.10.0
libtpu: 0.0.40
codegen_flags: <defaults>
</compile_context>

<pallas_src>
import functools

import jax
import jax.numpy as jnp
from jax.experimental import pallas as pl
from jax.experimental.pallas import tpu as pltpu

DELTA = 0.7          # delta for both sub-losses
GAMMA = 3            # focal gamma (hard-coded as p*p*p below)
SMOOTH = 1e-5        # tversky smoothing
_PAD_LOGIT = -100.0  # sigmoid ~ 0 and t = 0  =>  padded elements contribute ~0


def _loss_kernel(p_ref, t_ref,
                 s1_ref, s2_ref, sp_ref, st_ref, spt_ref,
                 *, total_rows, tile_rows, ragged):
    step = pl.program_id(0)

    @pl.when(step == 0)
    def _():
        s1_ref[...] = jnp.zeros_like(s1_ref)
        s2_ref[...] = jnp.zeros_like(s2_ref)
        sp_ref[...] = jnp.zeros_like(sp_ref)
        st_ref[...] = jnp.zeros_like(st_ref)
        spt_ref[...] = jnp.zeros_like(spt_ref)

    x = p_ref[...].astype(jnp.float32)
    t = t_ref[...].astype(jnp.float32)

    if ragged:
        # Only emitted when rows % tile_rows != 0.  Out-of-bounds rows of the
        # last grid step contain unspecified data; replace them with a dead
        # logit / zero target *before* any math so garbage (NaN/Inf) never
        # reaches the transcendentals or the sums.
        row = jax.lax.broadcasted_iota(jnp.int32, x.shape, 0)
        valid = row < (total_rows - step * tile_rows)
        x = jnp.where(valid, x, _PAD_LOGIT)
        t = jnp.where(valid, t, 0.0)

    # Shared transcendental: e = exp(-|x|) drives both sigmoid and logsigmoid.
    e = jnp.exp(-jnp.abs(x))
    log1p_e = jnp.log1p(e)
    r = 1.0 / (1.0 + e)                          # exact (keeps parity w/ reference)
    p = jnp.where(x >= 0, r, e * r)              # sigmoid(x)
    log_p = jnp.minimum(x, 0.0) - log1p_e        # logsigmoid(x)

    y = 1.0 - x                                  # logsigmoid(1 - x), as in the module
    log_p_ = jnp.minimum(y, 0.0) - jnp.log1p(jnp.exp(-jnp.abs(y)))
    # TODO(synk): v7x-only EUP trim — derive exp(-|1-x|) from e via one
    # reciprocal instead of a second exp once the bundle dump confirms EUP
    # (not VALU) is the binding slot.

    p3 = p * p * p                               # gamma == 3: stays on the VALU

    # Sublane-only reduces straight into the resident (1, 128) output blocks.
    s1_ref[...] += jnp.sum(log_p * t, axis=0, keepdims=True)
    s2_ref[...] += jnp.sum(p3 * log_p_ * (1.0 - t), axis=0, keepdims=True)
    sp_ref[...] += jnp.sum(p, axis=0, keepdims=True)
    st_ref[...] += jnp.sum(t, axis=0, keepdims=True)
    spt_ref[...] += jnp.sum(p * t, axis=0, keepdims=True)


def focusnet_loss(preds, targets, tile_rows=2048):
    """Returns (focal_loss, tversky_loss) scalars, matching FocusNetLoss.forward."""
    assert preds.shape == targets.shape
    numel = preds.size

    # Flatten (free for contiguous arrays).  Pad only if numel is not a
    # multiple of 128 (rare for NCHW image tensors); never pad to a tile/core
    # multiple — the ragged row tail is masked inside the kernel.
    p_flat = preds.reshape(-1)
    t_flat = targets.reshape(-1)
    rem = numel % 128
    if rem:
        pad = 128 - rem
        p_flat = jnp.pad(p_flat, (0, pad), constant_values=_PAD_LOGIT)
        t_flat = jnp.pad(t_flat, (0, pad))
    rows = p_flat.size // 128

    # Multiple of 32 rows => valid packed tile for f32 / bf16 / int8 inputs.
    tile_rows = max(32, (int(tile_rows) // 32) * 32)
    if rows <= tile_rows:
        tile_rows = rows                       # single full-extent block
    nsteps = -(-rows // tile_rows)
    ragged = (rows % tile_rows) != 0

    p2 = p_flat.reshape(rows, 128)
    t2 = t_flat.reshape(rows, 128)

    kernel = functools.partial(
        _loss_kernel, total_rows=rows, tile_rows=tile_rows, ragged=ragged)

    part_shape = jax.ShapeDtypeStruct((1, 128), jnp.float32)
    in_map = lambda i: (i, 0)
    out_map = lambda i: (0, 0)                 # resident accumulator block

    s1_p, s2_p, sp_p, st_p, spt_p = pl.pallas_call(
        kernel,
        out_shape=(part_shape,) * 5,
        grid_spec=pltpu.PrefetchScalarGridSpec(
            num_scalar_prefetch=0,
            grid=(nsteps,),
            in_specs=[pl.BlockSpec((tile_rows, 128), in_map),
                      pl.BlockSpec((tile_rows, 128), in_map)],
            out_specs=[pl.BlockSpec((1, 128), out_map)] * 5,
        ),
        compiler_params=pltpu.CompilerParams(
            dimension_semantics=("arbitrary",)),
    )(p2, t2)

    # Final cross-lane combine + scalar math in plain JAX.
    s_lp_t = jnp.sum(s1_p)                     # sum(logsigmoid(x) * t)
    s_foc2 = jnp.sum(s2_p)                     # sum(p^3 * logsigmoid(1-x) * (1-t))
    sum_p = jnp.sum(sp_p)
    sum_t = jnp.sum(st_p)
    tp = jnp.sum(spt_p)

    focal = (-DELTA * s_lp_t - (1.0 - DELTA) * s_foc2) * (1.0 / numel)
    fp = sum_p - tp                            # FP = sum(p) - TP
    fn = sum_t - tp                            # FN = sum(t) - TP
    tversky = 1.0 - tp / (tp + DELTA * fp + (1.0 - DELTA) * fn + SMOOTH)
    return focal, tversky


def _reference(preds, targets):
    """Pure-JAX reference mirroring the PyTorch module."""
    x = preds.astype(jnp.float32)
    t = targets.astype(jnp.float32)
    p = jax.nn.sigmoid(x)
    log_p = jax.nn.log_sigmoid(x)
    log_p_ = jax.nn.log_sigmoid(1.0 - x)
    batch_loss = -DELTA * log_p * t - (1.0 - DELTA) * (p ** GAMMA) * log_p_ * (1.0 - t)
    fl = jnp.mean(batch_loss)
    tp = jnp.sum(p * t)
    fp = jnp.sum(p * (1.0 - t))
    fn = jnp.sum((1.0 - p) * t)
    ti = tp / (tp + DELTA * fp + (1.0 - DELTA) * fn + SMOOTH)
    return fl, 1.0 - ti


if __name__ == "__main__":
    key = jax.random.PRNGKey(0)
    k1, k2 = jax.random.split(key)
    # Matches the PyTorch NCHW inputs of BinaryFocal/Tversky loss.
    preds = jax.random.normal(k1, (2, 4, 16, 16), dtype=jnp.float32)
    targets = (jax.random.uniform(k2, (2, 4, 16, 16)) > 0.5).astype(jnp.float32)

    fl, tl = focusnet_loss(preds, targets)
    jax.block_until_ready((fl, tl))

    fl_ref, tl_ref = _reference(preds, targets)
    assert jnp.allclose(fl, fl_ref, rtol=1e-4, atol=1e-5), (fl, fl_ref)
    assert jnp.allclose(tl, tl_ref, rtol=1e-4, atol=1e-5), (tl, tl_ref)

    print("KERNEL_OK")
</pallas_src>

<mosaic_0001>
module attributes {stable_mosaic.version = 11 : i64} {
  func.func @_loss_kernel(%arg0: i32, %arg1: memref<16x128xf32, #tpu.memory_space<vmem>>, %arg2: memref<16x128xf32, #tpu.memory_space<vmem>>, %arg3: memref<1x128xf32, #tpu.memory_space<vmem>>, %arg4: memref<1x128xf32, #tpu.memory_space<vmem>>, %arg5: memref<1x128xf32, #tpu.memory_space<vmem>>, %arg6: memref<1x128xf32, #tpu.memory_space<vmem>>, %arg7: memref<1x128xf32, #tpu.memory_space<vmem>>) attributes {dimension_semantics = [#tpu.dimension_semantics<arbitrary>], iteration_bounds = array<i64: 1>, scalar_prefetch = 0 : i64, scratch_operands = 0 : i64, tpu.core_type = #tpu.core_type<tc>, window_params = [{transform_indices = @transform_0, window_bounds = array<i64: 16, 128>}, {transform_indices = @transform_1, window_bounds = array<i64: 16, 128>}, {pipeline_mode = #tpu.pipeline_mode<synchronous>, transform_indices = @transform_2, window_bounds = array<i64: 1, 128>}, {pipeline_mode = #tpu.pipeline_mode<synchronous>, transform_indices = @transform_3, window_bounds = array<i64: 1, 128>}, {pipeline_mode = #tpu.pipeline_mode<synchronous>, transform_indices = @transform_4, window_bounds = array<i64: 1, 128>}, {pipeline_mode = #tpu.pipeline_mode<synchronous>, transform_indices = @transform_5, window_bounds = array<i64: 1, 128>}, {pipeline_mode = #tpu.pipeline_mode<synchronous>, transform_indices = @transform_6, window_bounds = array<i64: 1, 128>}]} {
    %c0_i32 = arith.constant 0 : i32
    %0 = arith.cmpi eq, %arg0, %c0_i32 : i32
    %1 = arith.extui %0 : i1 to i32
    %c0_i32_0 = arith.constant 0 : i32
    %2 = arith.cmpi ne, %1, %c0_i32_0 : i32
    scf.if %2 {
      %cst_37 = arith.constant 0.000000e+00 : f32
      %64 = vector.broadcast %cst_37 : f32 to vector<1x128xf32>
      %c0_38 = arith.constant 0 : index
      %c0_39 = arith.constant 0 : index
      %65 = vector.load %arg3[%c0_38, %c0_39] : memref<1x128xf32, #tpu.memory_space<vmem>>, vector<1x128xf32>
      tpu.vector_store %arg3[%c0_38, %c0_39], %64 {strides = array<i32>} : memref<1x128xf32, #tpu.memory_space<vmem>>, vector<1x128xf32>,
      %cst_40 = arith.constant 0.000000e+00 : f32
      %66 = vector.broadcast %cst_40 : f32 to vector<1x128xf32>
      %c0_41 = arith.constant 0 : index
      %c0_42 = arith.constant 0 : index
      %67 = vector.load %arg4[%c0_41, %c0_42] : memref<1x128xf32, #tpu.memory_space<vmem>>, vector<1x128xf32>
      tpu.vector_store %arg4[%c0_41, %c0_42], %66 {strides = array<i32>} : memref<1x128xf32, #tpu.memory_space<vmem>>, vector<1x128xf32>,
      %cst_43 = arith.constant 0.000000e+00 : f32
      %68 = vector.broadcast %cst_43 : f32 to vector<1x128xf32>
      %c0_44 = arith.constant 0 : index
      %c0_45 = arith.constant 0 : index
      %69 = vector.load %arg5[%c0_44, %c0_45] : memref<1x128xf32, #tpu.memory_space<vmem>>, vector<1x128xf32>
      tpu.vector_store %arg5[%c0_44, %c0_45], %68 {strides = array<i32>} : memref<1x128xf32, #tpu.memory_space<vmem>>, vector<1x128xf32>,
      %cst_46 = arith.constant 0.000000e+00 : f32
      %70 = vector.broadcast %cst_46 : f32 to vector<1x128xf32>
      %c0_47 = arith.constant 0 : index
      %c0_48 = arith.constant 0 : index
      %71 = vector.load %arg6[%c0_47, %c0_48] : memref<1x128xf32, #tpu.memory_space<vmem>>, vector<1x128xf32>
      tpu.vector_store %arg6[%c0_47, %c0_48], %70 {strides = array<i32>} : memref<1x128xf32, #tpu.memory_space<vmem>>, vector<1x128xf32>,
      %cst_49 = arith.constant 0.000000e+00 : f32
      %72 = vector.broadcast %cst_49 : f32 to vector<1x128xf32>
      %c0_50 = arith.constant 0 : index
      %c0_51 = arith.constant 0 : index
      %73 = vector.load %arg7[%c0_50, %c0_51] : memref<1x128xf32, #tpu.memory_space<vmem>>, vector<1x128xf32>
      tpu.vector_store %arg7[%c0_50, %c0_51], %72 {strides = array<i32>} : memref<1x128xf32, #tpu.memory_space<vmem>>, vector<1x128xf32>,
    } else {
    }
    %c0 = arith.constant 0 : index
    %c0_1 = arith.constant 0 : index
    %3 = vector.load %arg1[%c0, %c0_1] : memref<16x128xf32, #tpu.memory_space<vmem>>, vector<16x128xf32>
    %c0_2 = arith.constant 0 : index
    %c0_3 = arith.constant 0 : index
    %4 = vector.load %arg2[%c0_2, %c0_3] : memref<16x128xf32, #tpu.memory_space<vmem>>, vector<16x128xf32>
    %5 = math.absf %3 : vector<16x128xf32>
    %cst = arith.constant 0.000000e+00 : f32
    %6 = vector.broadcast %cst : f32 to vector<16x128xf32>
    %7 = arith.subf %6, %5 : vector<16x128xf32>
    %8 = math.exp %7 : vector<16x128xf32>
    %9 = math.log1p %8 : vector<16x128xf32>
    %cst_4 = arith.constant 1.000000e+00 : f32
    %10 = vector.broadcast %cst_4 : f32 to vector<16x128xf32>
    %11 = arith.addf %10, %8 : vector<16x128xf32>
    %cst_5 = arith.constant 1.000000e+00 : f32
    %12 = vector.broadcast %cst_5 : f32 to vector<16x128xf32>
    %13 = arith.divf %12, %11 : vector<16x128xf32>
    %cst_6 = arith.constant 0.000000e+00 : f32
    %14 = vector.broadcast %cst_6 : f32 to vector<16x128xf32>
    %15 = arith.cmpf oge, %3, %14 : vector<16x128xf32>
    %16 = arith.mulf %8, %13 : vector<16x128xf32>
    %17 = arith.select %15, %13, %16 : vector<16x128xi1>, vector<16x128xf32>
    %cst_7 = arith.constant 0.000000e+00 : f32
    %18 = vector.broadcast %cst_7 : f32 to vector<16x128xf32>
    %19 = arith.minimumf %3, %18 : vector<16x128xf32>
    %20 = arith.subf %19, %9 : vector<16x128xf32>
    %cst_8 = arith.constant 1.000000e+00 : f32
    %21 = vector.broadcast %cst_8 : f32 to vector<16x128xf32>
    %22 = arith.subf %21, %3 : vector<16x128xf32>
    %cst_9 = arith.constant 0.000000e+00 : f32
    %23 = vector.broadcast %cst_9 : f32 to vector<16x128xf32>
    %24 = arith.minimumf %22, %23 : vector<16x128xf32>
    %25 = math.absf %22 : vector<16x128xf32>
    %cst_10 = arith.constant 0.000000e+00 : f32
    %26 = vector.broadcast %cst_10 : f32 to vector<16x128xf32>
    %27 = arith.subf %26, %25 : vector<16x128xf32>
    %28 = math.exp %27 : vector<16x128xf32>
    %29 = math.log1p %28 : vector<16x128xf32>
    %30 = arith.subf %24, %29 : vector<16x128xf32>
    %31 = arith.mulf %17, %17 : vector<16x128xf32>
    %32 = arith.mulf %31, %17 : vector<16x128xf32>
    %c0_11 = arith.constant 0 : index
    %c0_12 = arith.constant 0 : index
    %33 = vector.load %arg3[%c0_11, %c0_12] : memref<1x128xf32, #tpu.memory_space<vmem>>, vector<1x128xf32>
    %34 = arith.mulf %20, %4 : vector<16x128xf32>
    %cst_13 = arith.constant dense<0.000000e+00> : vector<128xf32>
    %35 = vector.multi_reduction <add>, %34, %cst_13 [0] : vector<16x128xf32> to vector<128xf32>
    %36 = vector.shape_cast %35 : vector<128xf32> to vector<1x128xf32>
    %37 = arith.addf %33, %36 : vector<1x128xf32>
    %c0_14 = arith.constant 0 : index
    %c0_15 = arith.constant 0 : index
    %38 = vector.load %arg3[%c0_14, %c0_15] : memref<1x128xf32, #tpu.memory_space<vmem>>, vector<1x128xf32>
    tpu.vector_store %arg3[%c0_14, %c0_15], %37 {strides = array<i32>} : memref<1x128xf32, #tpu.memory_space<vmem>>, vector<1x128xf32>,
    %c0_16 = arith.constant 0 : index
    %c0_17 = arith.constant 0 : index
    %39 = vector.load %arg4[%c0_16, %c0_17] : memref<1x128xf32, #tpu.memory_space<vmem>>, vector<1x128xf32>
    %40 = arith.mulf %32, %30 : vector<16x128xf32>
    %cst_18 = arith.constant 1.000000e+00 : f32
    %41 = vector.broadcast %cst_18 : f32 to vector<16x128xf32>
    %42 = arith.subf %41, %4 : vector<16x128xf32>
    %43 = arith.mulf %40, %42 : vector<16x128xf32>
    %cst_19 = arith.constant dense<0.000000e+00> : vector<128xf32>
    %44 = vector.multi_reduction <add>, %43, %cst_19 [0] : vector<16x128xf32> to vector<128xf32>
    %45 = vector.shape_cast %44 : vector<128xf32> to vector<1x128xf32>
    %46 = arith.addf %39, %45 : vector<1x128xf32>
    %c0_20 = arith.constant 0 : index
    %c0_21 = arith.constant 0 : index
    %47 = vector.load %arg4[%c0_20, %c0_21] : memref<1x128xf32, #tpu.memory_space<vmem>>, vector<1x128xf32>
    tpu.vector_store %arg4[%c0_20, %c0_21], %46 {strides = array<i32>} : memref<1x128xf32, #tpu.memory_space<vmem>>, vector<1x128xf32>,
    %c0_22 = arith.constant 0 : index
    %c0_23 = arith.constant 0 : index
    %48 = vector.load %arg5[%c0_22, %c0_23] : memref<1x128xf32, #tpu.memory_space<vmem>>, vector<1x128xf32>
    %cst_24 = arith.constant dense<0.000000e+00> : vector<128xf32>
    %49 = vector.multi_reduction <add>, %17, %cst_24 [0] : vector<16x128xf32> to vector<128xf32>
    %50 = vector.shape_cast %49 : vector<128xf32> to vector<1x128xf32>
    %51 = arith.addf %48, %50 : vector<1x128xf32>
    %c0_25 = arith.constant 0 : index
    %c0_26 = arith.constant 0 : index
    %52 = vector.load %arg5[%c0_25, %c0_26] : memref<1x128xf32, #tpu.memory_space<vmem>>, vector<1x128xf32>
    tpu.vector_store %arg5[%c0_25, %c0_26], %51 {strides = array<i32>} : memref<1x128xf32, #tpu.memory_space<vmem>>, vector<1x128xf32>,
    %c0_27 = arith.constant 0 : index
    %c0_28 = arith.constant 0 : index
    %53 = vector.load %arg6[%c0_27, %c0_28] : memref<1x128xf32, #tpu.memory_space<vmem>>, vector<1x128xf32>
    %cst_29 = arith.constant dense<0.000000e+00> : vector<128xf32>
    %54 = vector.multi_reduction <add>, %4, %cst_29 [0] : vector<16x128xf32> to vector<128xf32>
    %55 = vector.shape_cast %54 : vector<128xf32> to vector<1x128xf32>
    %56 = arith.addf %53, %55 : vector<1x128xf32>
    %c0_30 = arith.constant 0 : index
    %c0_31 = arith.constant 0 : index
    %57 = vector.load %arg6[%c0_30, %c0_31] : memref<1x128xf32, #tpu.memory_space<vmem>>, vector<1x128xf32>
    tpu.vector_store %arg6[%c0_30, %c0_31], %56 {strides = array<i32>} : memref<1x128xf32, #tpu.memory_space<vmem>>, vector<1x128xf32>,
    %c0_32 = arith.constant 0 : index
    %c0_33 = arith.constant 0 : index
    %58 = vector.load %arg7[%c0_32, %c0_33] : memref<1x128xf32, #tpu.memory_space<vmem>>, vector<1x128xf32>
    %59 = arith.mulf %17, %4 : vector<16x128xf32>
    %cst_34 = arith.constant dense<0.000000e+00> : vector<128xf32>
    %60 = vector.multi_reduction <add>, %59, %cst_34 [0] : vector<16x128xf32> to vector<128xf32>
    %61 = vector.shape_cast %60 : vector<128xf32> to vector<1x128xf32>
    %62 = arith.addf %58, %61 : vector<1x128xf32>
    %c0_35 = arith.constant 0 : index
    %c0_36 = arith.constant 0 : index
    %63 = vector.load %arg7[%c0_35, %c0_36] : memref<1x128xf32, #tpu.memory_space<vmem>>, vector<1x128xf32>
    tpu.vector_store %arg7[%c0_35, %c0_36], %62 {strides = array<i32>} : memref<1x128xf32, #tpu.memory_space<vmem>>, vector<1x128xf32>,
    return
  }
  func.func @transform_0(%arg0: i32) -> (i32, i32) {
    %c0_i32 = arith.constant 0 : i32
    %c0_i32_0 = arith.constant 0 : i32
    return %arg0, %c0_i32 : i32, i32
  }
  func.func @transform_1(%arg0: i32) -> (i32, i32) {
    %c0_i32 = arith.constant 0 : i32
    %c0_i32_0 = arith.constant 0 : i32
    return %arg0, %c0_i32 : i32, i32
  }
  func.func @transform_2(%arg0: i32) -> (i32, i32) {
    %c0_i32 = arith.constant 0 : i32
    %c0_i32_0 = arith.constant 0 : i32
    %c0_i32_1 = arith.constant 0 : i32
    return %c0_i32, %c0_i32_0 : i32, i32
  }
  func.func @transform_3(%arg0: i32) -> (i32, i32) {
    %c0_i32 = arith.constant 0 : i32
    %c0_i32_0 = arith.constant 0 : i32
    %c0_i32_1 = arith.constant 0 : i32
    return %c0_i32, %c0_i32_0 : i32, i32
  }
  func.func @transform_4(%arg0: i32) -> (i32, i32) {
    %c0_i32 = arith.constant 0 : i32
    %c0_i32_0 = arith.constant 0 : i32
    %c0_i32_1 = arith.constant 0 : i32
    return %c0_i32, %c0_i32_0 : i32, i32
  }
  func.func @transform_5(%arg0: i32) -> (i32, i32) {
    %c0_i32 = arith.constant 0 : i32
    %c0_i32_0 = arith.constant 0 : i32
    %c0_i32_1 = arith.constant 0 : i32
    return %c0_i32, %c0_i32_0 : i32, i32
  }
  func.func @transform_6(%arg0: i32) -> (i32, i32) {
    %c0_i32 = arith.constant 0 : i32
    %c0_i32_0 = arith.constant 0 : i32
    %c0_i32_1 = arith.constant 0 : i32
    return %c0_i32, %c0_i32_0 : i32, i32
  }
}

</mosaic_0001>

<llo_original>
// kernel: tpu_custom_call.1
$region0: #{tpu_custom_call.1}
  #allocation0 [shape = 'u32[]', space=smem, size = 0x4, offset = 0x4, fixed_abs, tag = 'smem constant byte address 0x4 - core index']
  #allocation1 [shape = 'u32[144,128]{1,0:T(1,128)}', space=vmem, size = 0x12000, scoped, tag = 'internal scratch']
  %s0 = inlined_call_operand.hbm [shape: f32[16,128], index: 0, kind: input, shape index: {}]
  %s1 = inlined_call_operand.hbm [shape: f32[16,128], index: 1, kind: input, shape index: {}]
  %s2 = inlined_call_operand.hbm [shape: f32[1,128], index: 2, kind: output, shape index: {0}]
  %s3 = inlined_call_operand.hbm [shape: f32[1,128], index: 3, kind: output, shape index: {1}]
  %s4 = inlined_call_operand.hbm [shape: f32[1,128], index: 4, kind: output, shape index: {2}]
  %s5 = inlined_call_operand.hbm [shape: f32[1,128], index: 5, kind: output, shape index: {3}]
  %s6 = inlined_call_operand.hbm [shape: f32[1,128], index: 6, kind: output, shape index: {4}]
  %7 = xla_tuple %s2, %s3, %s4, %s5, %s6
  %s8 = sld [smem:[#allocation0]]
  $region62: #{tpu_custom_call.1} parent=0
    _
  %s10 = ssub.s32 1, %s8
  %s11 = scalar_select 0, %s10, %s8
  $region1: #{tpu_custom_call.1} parent=0
    #allocation2 [shape = 'u8[8192]{0}', space=vmem, size = 0x2000, scoped, tag = 'input window, operand 0, single buffered']
    #allocation3 [shape = 's32[1]{0}', space=sflag, size = 0x4, scoped, tag = 'scoped memory for tpu_custom_call.1']
    #allocation4 [shape = 's32[1]{0}', space=sflag, size = 0x4, scoped, tag = 'scoped memory for tpu_custom_call.1']
    #allocation5 [shape = 'u8[8192]{0}', space=vmem, size = 0x2000, scoped, tag = 'input window, operand 1, single buffered']
    #allocation6 [shape = 's32[1]{0}', space=sflag, size = 0x4, scoped, tag = 'scoped memory for tpu_custom_call.1']
    #allocation7 [shape = 'u8[512]{0}', space=vmem, size = 0x400, scoped, tag = 'output window, operand 0, single buffered']
    #allocation8 [shape = 'u8[512]{0}', space=vmem, size = 0x400, scoped, tag = 'output window, operand 1, single buffered']
    #allocation9 [shape = 's32[1]{0}', space=sflag, size = 0x4, scoped, tag = 'scoped memory for tpu_custom_call.1']
    #allocation10 [shape = 'u8[512]{0}', space=vmem, size = 0x400, scoped, tag = 'output window, operand 2, single buffered']
    #allocation11 [shape = 'u8[512]{0}', space=vmem, size = 0x400, scoped, tag = 'output window, operand 3, single buffered']
    #allocation12 [shape = 's32[1]{0}', space=sflag, size = 0x4, scoped, tag = 'scoped memory for tpu_custom_call.1']
    #allocation13 [shape = 'u8[512]{0}', space=vmem, size = 0x400, scoped, tag = 'output window, operand 4, single buffered']
    %12 = vsyncpa [#allocation3], 0
    %13 = vsyncpa [#allocation6], 0
    %14 = vsyncpa [#allocation4], 0
    %15 = vsyncpa [#allocation9], 0
    %16 = vsyncpa [#allocation12], 0
    // Predicated region
    $region2: #{tpu_custom_call.1} parent=1 // pred_check
      _
    $region3: #{tpu_custom_call.1} parent=1 // pred_check_branch
      %18 = sbr.rel (0) target = $region5
    $region4: #{tpu_custom_call.1} parent=1 // pred_region
      %s20 = ssub.s32 256, 256
      %21 = vsyncadd [#allocation3], %s20
      %s22 = sshll.u32 [#allocation2], 4
      %s23 = int_to_ptr.vmem [resolvable:$true] %s22
      %28 = dma.hbm_to_vmem [thread:$0]  %s0, 256, %s23, [#allocation3], 128, 128, 8
    $region5: #{tpu_custom_call.1} parent=1 // pred_fallthru
      _
    // Predicated region
    $region6: #{tpu_custom_call.1} parent=1 // pred_check
      _
    $region7: #{tpu_custom_call.1} parent=1 // pred_check_branch
      %30 = sbr.rel (0) target = $region9
    $region8: #{tpu_custom_call.1} parent=1 // pred_region
      %s32 = ssub.s32 256, 256
      %33 = vsyncadd [#allocation6], %s32
      %s34 = sshll.u32 [#allocation5], 4
      %s35 = int_to_ptr.vmem [resolvable:$true] %s34
      %40 = dma.hbm_to_vmem [thread:$0]  %s1, 256, %s35, [#allocation6], 128, 128, 8
    $region9: #{tpu_custom_call.1} parent=1 // pred_fallthru
      _
    // Predicated region
    $region10: #{tpu_custom_call.1} parent=1 // pred_check
      _
    $region11: #{tpu_custom_call.1} parent=1 // pred_check_branch
      %42 = sbr.rel (0) target = $region13
    $region12: #{tpu_custom_call.1} parent=1 // pred_region
      %43 = dma.done [#allocation3], 256
    $region13: #{tpu_custom_call.1} parent=1 // pred_fallthru
      _
    // Predicated region
    $region14: #{tpu_custom_call.1} parent=1 // pred_check
      _
    $region15: #{tpu_custom_call.1} parent=1 // pred_check_branch
      %45 = sbr.rel (0) target = $region17
    $region16: #{tpu_custom_call.1} parent=1 // pred_region
      %46 = dma.done [#allocation6], 256
    $region17: #{tpu_custom_call.1} parent=1 // pred_fallthru
      _
    %p47 = scmp.eq.s32.totalorder 0, 0
    // Predicated region
    $region18: #{tpu_custom_call.1} parent=1 // pred_check
      %p48 = pneg %p47
    $region19: #{tpu_custom_call.1} parent=1 // pred_check_branch
      %50 = sbr.rel (%p48) target = $region21
    $region20: #{tpu_custom_call.1} parent=1 // pred_region
      %51 = vst [vmem:[#allocation7] sm:$0x1] 0.0
      %52 = vst [vmem:[#allocation8] sm:$0x1] 0.0
      %53 = vst [vmem:[#allocation10] sm:$0x1] 0.0
      %54 = vst [vmem:[#allocation11] sm:$0x1] 0.0
      %55 = vst [vmem:[#allocation13] sm:$0x1] 0.0
    $region21: #{tpu_custom_call.1} parent=1 // pred_fallthru
      _
    %v56 = vld [vmem:[#allocation2] sm:$0xff]
    %v57 = vld [vmem:[#allocation2 + $0x8] sm:$0xff]
    %v58 = vld [vmem:[#allocation5] sm:$0xff]
    %v59 = vld [vmem:[#allocation5 + $0x8] sm:$0xff]
    %v60 = vand.u32 2147483647, %v56
    %v61 = vand.u32 2147483647, %v57
    %v62 = vsub.f32 0.0, %v60
    %v63 = vsub.f32 0.0, %v61
    %v64 = vmul.f32 %v62, 1.442695
    %v65 = vpow.pop %v64
    %v66 = vmul.f32 %v63, 1.442695
    %v67 = vpow.pop %v66
    %v68 = vadd.f32 %v65, 1.0
    %v69 = vlog2.pop %v68
    %v70 = vmul.f32 %v69, 0.6931472
    %v71 = vmul.f32 -0.5, %v65
    %v72 = vadd.f32 %v71, 1.0
    %v73 = vmul.f32 %v72, %v65
    %v74 = vand.u32 2147483647, %v65
    %vm75 = vcmp.lt.f32.partialorder %v74, 0.0004427343
    %v76 = vsel %vm75, %v73, %v70
    %v77 = vadd.f32 %v67, 1.0
    %v78 = vlog2.pop %v77
    %v79 = vmul.f32 %v78, 0.6931472
    %v80 = vmul.f32 -0.5, %v67
    %v81 = vadd.f32 %v80, 1.0
    %v82 = vmul.f32 %v81, %v67
    %v83 = vand.u32 2147483647, %v67
    %vm84 = vcmp.lt.f32.partialorder %v83, 0.0004427343
    %v85 = vsel %vm84, %v82, %v79
    %v86 = vadd.f32 %v65, 1.0
    %v87 = vadd.f32 %v67, 1.0
    %v88 = vrcp.pop %v86
    %v89 = vmul.f32 1.0, %v88
    %v90 = vrcp.pop %v87
    %v91 = vmul.f32 1.0, %v90
    %vm92 = vcmp.ge.f32.partialorder %v56, 0.0
    %vm93 = vcmp.ge.f32.partialorder %v57, 0.0
    %v94 = vmul.f32 %v65, %v89
    %v95 = vmul.f32 %v67, %v91
    %v96 = vsel %vm92, %v89, %v94
    %v97 = vsel %vm93, %v91, %v95
    %v98 = vmin.f32 %v56, 0.0
    %v99 = vmin.f32 %v57, 0.0
    %v100 = vsub.f32 %v98, %v76
    %v101 = vsub.f32 %v99, %v85
    %v102 = vsub.f32 1.0, %v56
    %v103 = vsub.f32 1.0, %v57
    %v104 = vmin.f32 %v102, 0.0
    %v105 = vmin.f32 %v103, 0.0
    %v106 = vand.u32 2147483647, %v102
    %v107 = vand.u32 2147483647, %v103
    %v108 = vsub.f32 0.0, %v106
    %v109 = vsub.f32 0.0, %v107
    %v110 = vmul.f32 %v108, 1.442695
    %v111 = vpow.pop %v110
    %v112 = vmul.f32 %v109, 1.442695
    %v113 = vpow.pop %v112
    %v114 = vadd.f32 %v111, 1.0
    %v115 = vlog2.pop %v114
    %v116 = vmul.f32 %v115, 0.6931472
    %v117 = vmul.f32 -0.5, %v111
    %v118 = vadd.f32 %v117, 1.0
    %v119 = vmul.f32 %v118, %v111
    %v120 = vand.u32 2147483647, %v111
    %vm121 = vcmp.lt.f32.partialorder %v120, 0.0004427343
    %v122 = vsel %vm121, %v119, %v116
    %v123 = vadd.f32 %v113, 1.0
    %v124 = vlog2.pop %v123
    %v125 = vmul.f32 %v124, 0.6931472
    %v126 = vmul.f32 -0.5, %v113
    %v127 = vadd.f32 %v126, 1.0
    %v128 = vmul.f32 %v127, %v113
    %v129 = vand.u32 2147483647, %v113
    %vm130 = vcmp.lt.f32.partialorder %v129, 0.0004427343
    %v131 = vsel %vm130, %v128, %v125
    %v132 = vsub.f32 %v104, %v122
    %v133 = vsub.f32 %v105, %v131
    %v134 = vmul.f32 %v96, %v96
    %v135 = vmul.f32 %v97, %v97
    %v136 = vmul.f32 %v134, %v96
    %v137 = vmul.f32 %v135, %v97
    %v138 = vld [vmem:[#allocation7] sm:$0x1]
    %v139 = vmul.f32 %v100, %v58
    %v140 = vmul.f32 %v101, %v59
    %v141 = vadd.f32 %v139, %v140
    %v142 = vrot.slane %v141, 4
    %v143 = vadd.f32 %v141, %v142
    %v144 = vrot.slane %v143, 2
    %v145 = vadd.f32 %v143, %v144
    %v146 = vrot.slane %v145, 1
    %v147 = vadd.f32 %v145, %v146
    %v148 = vadd.f32 %v138, %v147
    %149 = vst [vmem:[#allocation7] sm:$0x1] %v148
    %v150 = vld [vmem:[#allocation8] sm:$0x1]
    %v151 = vmul.f32 %v136, %v132
    %v152 = vmul.f32 %v137, %v133
    %v153 = vsub.f32 1.0, %v58
    %v154 = vsub.f32 1.0, %v59
    %v155 = vmul.f32 %v151, %v153
    %v156 = vmul.f32 %v152, %v154
    %v157 = vadd.f32 %v155, %v156
    %v158 = vrot.slane %v157, 4
    %v159 = vadd.f32 %v157, %v158
    %v160 = vrot.slane %v159, 2
    %v161 = vadd.f32 %v159, %v160
    %v162 = vrot.slane %v161, 1
    %v163 = vadd.f32 %v161, %v162
    %v164 = vadd.f32 %v150, %v163
    %165 = vst [vmem:[#allocation8] sm:$0x1] %v164
    %v166 = vld [vmem:[#allocation10] sm:$0x1]
    %v167 = vadd.f32 %v96, %v97
    %v168 = vrot.slane %v167, 4
    %v169 = vadd.f32 %v167, %v168
    %v170 = vrot.slane %v169, 2
    %v171 = vadd.f32 %v169, %v170
    %v172 = vrot.slane %v171, 1
    %v173 = vadd.f32 %v171, %v172
    %v174 = vadd.f32 %v166, %v173
    %175 = vst [vmem:[#allocation10] sm:$0x1] %v174
    %v176 = vld [vmem:[#allocation11] sm:$0x1]
    %v177 = vadd.f32 %v58, %v59
    %v178 = vrot.slane %v177, 4
    %v179 = vadd.f32 %v177, %v178
    %v180 = vrot.slane %v179, 2
    %v181 = vadd.f32 %v179, %v180
    %v182 = vrot.slane %v181, 1
    %v183 = vadd.f32 %v181, %v182
    %v184 = vadd.f32 %v176, %v183
    %185 = vst [vmem:[#allocation11] sm:$0x1] %v184
    %v186 = vld [vmem:[#allocation13] sm:$0x1]
    %v187 = vmul.f32 %v96, %v58
    %v188 = vmul.f32 %v97, %v59
    %v189 = vadd.f32 %v187, %v188
    %v190 = vrot.slane %v189, 4
    %v191 = vadd.f32 %v189, %v190
    %v192 = vrot.slane %v191, 2
    %v193 = vadd.f32 %v191, %v192
    %v194 = vrot.slane %v193, 1
    %v195 = vadd.f32 %v193, %v194
    %v196 = vadd.f32 %v186, %v195
    %197 = vst [vmem:[#allocation13] sm:$0x1] %v196
    // Predicated region
    $region22: #{tpu_custom_call.1} parent=1 // pred_check
      _
    $region23: #{tpu_custom_call.1} parent=1 // pred_check_branch
      %199 = sbr.rel (0) target = $region25
    $region24: #{tpu_custom_call.1} parent=1 // pred_region
      %s201 = ssub.s32 16, 16
      %202 = vsyncadd [#allocation4], %s201
      %s204 = sshll.u32 [#allocation7], 4
      %s205 = int_to_ptr.vmem [resolvable:$true] %s204
      %207 = dma.vmem_to_hbm [thread:$0]  %s205, 16, %s2, [#allocation4]
    $region25: #{tpu_custom_call.1} parent=1 // pred_fallthru
      _
    // Predicated region
    $region26: #{tpu_custom_call.1} parent=1 // pred_check
      _
    $region27: #{tpu_custom_call.1} parent=1 // pred_check_branch
      %209 = sbr.rel (0) target = $region29
    $region28: #{tpu_custom_call.1} parent=1 // pred_region
      %s211 = ssub.s32 16, 16
      %212 = vsyncadd [#allocation9], %s211
      %s214 = sshll.u32 [#allocation8], 4
      %s215 = int_to_ptr.vmem [resolvable:$true] %s214
      %217 = dma.vmem_to_hbm [thread:$0]  %s215, 16, %s3, [#allocation9]
    $region29: #{tpu_custom_call.1} parent=1 // pred_fallthru
      _
    // Predicated region
    $region30: #{tpu_custom_call.1} parent=1 // pred_check
      _
    $region31: #{tpu_custom_call.1} parent=1 // pred_check_branch
      %219 = sbr.rel (0) target = $region33
    $region32: #{tpu_custom_call.1} parent=1 // pred_region
      %s221 = ssub.s32 16, 16
      %222 = vsyncadd [#allocation9], %s221
      %s224 = sshll.u32 [#allocation10], 4
      %s225 = int_to_ptr.vmem [resolvable:$true] %s224
      %227 = dma.vmem_to_hbm [thread:$0]  %s225, 16, %s4, [#allocation9]
    $region33: #{tpu_custom_call.1} parent=1 // pred_fallthru
      _
    // Predicated region
    $region34: #{tpu_custom_call.1} parent=1 // pred_check
      _
    $region35: #{tpu_custom_call.1} parent=1 // pred_check_branch
      %229 = sbr.rel (0) target = $region37
    $region36: #{tpu_custom_call.1} parent=1 // pred_region
      %s231 = ssub.s32 16, 16
      %232 = vsyncadd [#allocation12], %s231
      %s234 = sshll.u32 [#allocation11], 4
      %s235 = int_to_ptr.vmem [resolvable:$true] %s234
      %237 = dma.vmem_to_hbm [thread:$0]  %s235, 16, %s5, [#allocation12]
    $region37: #{tpu_custom_call.1} parent=1 // pred_fallthru
      _
    // Predicated region
    $region38: #{tpu_custom_call.1} parent=1 // pred_check
      _
    $region39: #{tpu_custom_call.1} parent=1 // pred_check_branch
      %239 = sbr.rel (0) target = $region41
    $region40: #{tpu_custom_call.1} parent=1 // pred_region
      %s241 = ssub.s32 16, 16
      %242 = vsyncadd [#allocation12], %s241
      %s244 = sshll.u32 [#allocation13], 4
      %s245 = int_to_ptr.vmem [resolvable:$true] %s244
      %247 = dma.vmem_to_hbm [thread:$0]  %s245, 16, %s6, [#allocation12]
    $region41: #{tpu_custom_call.1} parent=1 // pred_fallthru
      _
    // Predicated region
    $region42: #{tpu_custom_call.1} parent=1 // pred_check
      _
    $region43: #{tpu_custom_call.1} parent=1 // pred_check_branch
      %249 = sbr.rel (0) target = $region45
    $region44: #{tpu_custom_call.1} parent=1 // pred_region
      %250 = dma.done [#allocation4], 16
    $region45: #{tpu_custom_call.1} parent=1 // pred_fallthru
      _
    // Predicated region
    $region46: #{tpu_custom_call.1} parent=1 // pred_check
      _
    $region47: #{tpu_custom_call.1} parent=1 // pred_check_branch
      %252 = sbr.rel (0) target = $region49
    $region48: #{tpu_custom_call.1} parent=1 // pred_region
      %253 = dma.done [#allocation9], 16
    $region49: #{tpu_custom_call.1} parent=1 // pred_fallthru
      _
    // Predicated region
    $region50: #{tpu_custom_call.1} parent=1 // pred_check
      _
    $region51: #{tpu_custom_call.1} parent=1 // pred_check_branch
      %255 = sbr.rel (0) target = $region53
    $region52: #{tpu_custom_call.1} parent=1 // pred_region
      %256 = dma.done [#allocation9], 16
    $region53: #{tpu_custom_call.1} parent=1 // pred_fallthru
      _
    // Predicated region
    $region54: #{tpu_custom_call.1} parent=1 // pred_check
      _
    $region55: #{tpu_custom_call.1} parent=1 // pred_check_branch
      %258 = sbr.rel (0) target = $region57
    $region56: #{tpu_custom_call.1} parent=1 // pred_region
      %259 = dma.done [#allocation12], 16
    $region57: #{tpu_custom_call.1} parent=1 // pred_fallthru
      _
    // Predicated region
    $region58: #{tpu_custom_call.1} parent=1 // pred_check
      _
    $region59: #{tpu_custom_call.1} parent=1 // pred_check_branch
      %261 = sbr.rel (0) target = $region61
    $region60: #{tpu_custom_call.1} parent=1 // pred_region
      %262 = dma.done [#allocation12], 16
    $region61: #{tpu_custom_call.1} parent=1 // pred_fallthru
      _
    %263 = vsyncpa [#allocation3], 1
    %264 = vsyncpa [#allocation6], 1
    %265 = vsyncpa [#allocation4], 1
    %266 = vsyncpa [#allocation9], 1
    %267 = vsyncpa [#allocation12], 1

</llo_original>
